<compile_context>
chip_gen: v7x
topology: tpu7x:2x2x1
jax: 0.10.0
libtpu: 0.0.40
codegen_flags: <defaults>
</compile_context>

<pallas_src>
import jax
import jax.numpy as jnp
from jax import lax
from jax.experimental import pallas as pl
from jax.experimental.pallas import tpu as pltpu

# ---- synthetic "args" (mirrors QTranBase.__init__) ----
N_AGENTS = 4
N_ACTIONS = 8
STATE_DIM = 32                      # int(np.prod(args.state_shape))
HIDDEN_DIM = 32                     # args.hidden_dim
EMBED_DIM = 32                      # args.mixing_embed_dim
AE_DIM = HIDDEN_DIM + N_ACTIONS     # action-encoding width = 40
HID_FLAT = N_AGENTS * HIDDEN_DIM    # 128
ACT_FLAT = N_AGENTS * N_ACTIONS     # 32
AE_FLAT = N_AGENTS * AE_DIM         # 160

# packed-bias lane offsets (128-aligned so every in-kernel slice starts at lane 0)
_B_AE1 = 0      # width AE_FLAT      (160)
_B_AE2 = 256    # width AE_DIM       (40)
_B_QV1 = 384    # width 2*EMBED_DIM  (64)
_B_QV2 = 512    # width 2*EMBED_DIM  (64)
_B_TOTAL = 640

# per-row flop count for the CostEstimate (2 * MACs of all five matmuls)
_FLOPS_PER_ROW = 2 * (HID_FLAT * AE_FLAT + ACT_FLAT * AE_FLAT + AE_FLAT * AE_DIM
                      + STATE_DIM * 2 * EMBED_DIM + AE_DIM * 2 * EMBED_DIM
                      + (2 * EMBED_DIM) ** 2 + 2 * EMBED_DIM * 2)


def _round_up(x, m):
    return ((x + m - 1) // m) * m


def qtran_kernel(hid_ref, act_ref, st_ref,
                 ae_w1h_ref, ae_w1a_ref, ae_w2_ref,
                 qv_w1s_ref, qv_w1e_ref, qv_w2_ref, qv_w3_ref,
                 bias_ref, qv_b3_ref,
                 out_ref):
    f32 = jnp.float32
    cdt = ae_w1h_ref.dtype                  # matmul operand dtype (bf16 or f32)
    # Inputs arrive f32 from HBM (single pass); cast on the VPU, which has slack.
    hid = hid_ref[...].astype(cdt)          # (T, NA*H)
    act = act_ref[...].astype(cdt)          # (T, NA*A)
    st = st_ref[...].astype(cdt)            # (T, S)

    # packed biases (f32), static slices -> zero-cost views, lane-aligned offsets
    ae_b1 = bias_ref[:, _B_AE1:_B_AE1 + AE_FLAT]
    ae_b2 = bias_ref[:, _B_AE2:_B_AE2 + AE_DIM]
    qv_b1 = bias_ref[:, _B_QV1:_B_QV1 + 2 * EMBED_DIM]
    qv_b2 = bias_ref[:, _B_QV2:_B_QV2 + 2 * EMBED_DIM]

    # ---- action-encoding MLP, all agents in one pair of matmuls ----
    # block-diagonal ae_w1 keeps per-agent mixing; row-stacked ae_w2 folds the sum over
    # agents into the second matmul (ae_b2 already pre-scaled by N_AGENTS).
    pre = (jnp.dot(hid, ae_w1h_ref[...], preferred_element_type=f32)
           + jnp.dot(act, ae_w1a_ref[...], preferred_element_type=f32)
           + ae_b1)
    h_all = jnp.maximum(pre, 0.0).astype(cdt)                          # (T, NA*AE)
    enc = (jnp.dot(h_all, ae_w2_ref[...], preferred_element_type=f32)
           + ae_b2).astype(cdt)                                        # (T, AE)

    # ---- Q and V heads fused column-wise (cols 0:E -> Q, cols E:2E -> V) ----
    # layer 1: [state|enc] concat folded into split weights; V's enc-half is zeros.
    hg1 = jnp.maximum(jnp.dot(st, qv_w1s_ref[...], preferred_element_type=f32)
                      + jnp.dot(enc, qv_w1e_ref[...], preferred_element_type=f32)
                      + qv_b1, 0.0).astype(cdt)                        # (T, 2E)
    # layer 2: block-diagonal q_w2 (+) v_w2 keeps the two heads independent.
    hg2 = jnp.maximum(jnp.dot(hg1, qv_w2_ref[...], preferred_element_type=f32)
                      + qv_b2, 0.0).astype(cdt)                        # (T, 2E)
    # final Linear(embed -> 1) for both heads as one (2,2E) x (T,2E)^T trans-B dot:
    # lane-dense (2, T) output block, row 0 = Q, row 1 = V.
    trans_b = (((1,), (1,)), ((), ()))
    out_ref[...] = (lax.dot_general(qv_w3_ref[...], hg2, trans_b,
                                    preferred_element_type=f32) + qv_b3_ref[...])


# ---------------- parameters ----------------
def init_linear(key, in_dim, out_dim):
    # torch nn.Linear default init: U(-1/sqrt(fan_in), 1/sqrt(fan_in)); stored (in, out).
    k_w, k_b = jax.random.split(key)
    bound = 1.0 / float(in_dim) ** 0.5
    w = jax.random.uniform(k_w, (in_dim, out_dim), jnp.float32, -bound, bound)
    b = jax.random.uniform(k_b, (1, out_dim), jnp.float32, -bound, bound)
    return w, b


def make_params(key):
    keys = jax.random.split(key, 8)
    ae_w1, ae_b1 = init_linear(keys[0], AE_DIM, AE_DIM)
    ae_w2, ae_b2 = init_linear(keys[1], AE_DIM, AE_DIM)
    q_w1, q_b1 = init_linear(keys[2], STATE_DIM + AE_DIM, EMBED_DIM)
    q_w2, q_b2 = init_linear(keys[3], EMBED_DIM, EMBED_DIM)
    q_w3, q_b3 = init_linear(keys[4], EMBED_DIM, 1)
    v_w1, v_b1 = init_linear(keys[5], STATE_DIM, EMBED_DIM)
    v_w2, v_b2 = init_linear(keys[6], EMBED_DIM, EMBED_DIM)
    v_w3, v_b3 = init_linear(keys[7], EMBED_DIM, 1)
    return (ae_w1, ae_b1, ae_w2, ae_b2,
            q_w1, q_b1, q_w2, q_b2, q_w3, q_b3,
            v_w1, v_b1, v_w2, v_b2, v_w3, v_b3)


def _block_diag(mats):
    rows = sum(m.shape[0] for m in mats)
    cols = sum(m.shape[1] for m in mats)
    out = jnp.zeros((rows, cols), mats[0].dtype)
    r = c = 0
    for m in mats:
        out = out.at[r:r + m.shape[0], c:c + m.shape[1]].set(m)
        r += m.shape[0]
        c += m.shape[1]
    return out


def prepare_kernel_params(params, matmul_dtype=jnp.bfloat16):
    """Fold concats / agent-sum / Q+V head fusion into the weights.

    Matmul weights are cast to `matmul_dtype`; biases stay f32 and are packed into a
    single (1, 640) array at 128-aligned offsets.
    """
    (ae_w1, ae_b1, ae_w2, ae_b2,
     q_w1, q_b1, q_w2, q_b2, q_w3, q_b3,
     v_w1, v_b1, v_w2, v_b2, v_w3, v_b3) = params
    mm = lambda w: w.astype(matmul_dtype)

    # action-encoding MLP folding
    ae_w1h = _block_diag([ae_w1[:HIDDEN_DIM, :]] * N_AGENTS)   # (NA*H, NA*AE)
    ae_w1a = _block_diag([ae_w1[HIDDEN_DIM:, :]] * N_AGENTS)   # (NA*A, NA*AE)
    ae_w2s = jnp.tile(ae_w2, (N_AGENTS, 1))                    # (NA*AE, AE): agent-sum

    # Q/V head fusion (cols 0:E -> Q head, cols E:2E -> V head)
    qv_w1s = jnp.concatenate([q_w1[:STATE_DIM, :], v_w1], axis=1)            # (S, 2E)
    qv_w1e = jnp.concatenate([q_w1[STATE_DIM:, :],
                              jnp.zeros((AE_DIM, EMBED_DIM), q_w1.dtype)], axis=1)  # (AE, 2E)
    qv_w2 = _block_diag([q_w2, v_w2])                                        # (2E, 2E)
    qv_w3 = jnp.zeros((2, 2 * EMBED_DIM), jnp.float32)
    qv_w3 = qv_w3.at[0, :EMBED_DIM].set(q_w3[:, 0])
    qv_w3 = qv_w3.at[1, EMBED_DIM:].set(v_w3[:, 0])                          # (2, 2E)

    # packed biases (f32)
    bias = jnp.zeros((1, _B_TOTAL), jnp.float32)
    bias = bias.at[:, _B_AE1:_B_AE1 + AE_FLAT].set(jnp.tile(ae_b1, (1, N_AGENTS)))
    bias = bias.at[:, _B_AE2:_B_AE2 + AE_DIM].set(ae_b2 * N_AGENTS)
    bias = bias.at[:, _B_QV1:_B_QV1 + 2 * EMBED_DIM].set(
        jnp.concatenate([q_b1, v_b1], axis=1))
    bias = bias.at[:, _B_QV2:_B_QV2 + 2 * EMBED_DIM].set(
        jnp.concatenate([q_b2, v_b2], axis=1))
    qv_b3 = jnp.concatenate([q_b3, v_b3], axis=0).astype(jnp.float32)        # (2, 1)

    return (mm(ae_w1h), mm(ae_w1a), mm(ae_w2s),
            mm(qv_w1s), mm(qv_w1e), mm(qv_w2), mm(qv_w3),
            bias, qv_b3)


# ---------------- forward wrapper ----------------
def qtran_forward(kparams, state, hidden_states, actions_onehot, *,
                  tile_bt=2048, core_parallel=False):
    """Returns (q_outputs, v_outputs), each (bs*ts, 1) float32.

    core_parallel: set True on v7x (2 TensorCores per chip) to shard BT tiles across
    both cores via pltpu.CORE_PARALLEL; default uses the generation-safe PARALLEL.
    """
    bs, ts = state.shape[0], state.shape[1]
    bt = bs * ts
    # Pure reshapes; no pad, no pre-cast — the kernel reads f32 once and casts on-chip.
    states = state.reshape(bt, STATE_DIM)
    hidden = hidden_states.reshape(bt, HID_FLAT)
    actions = actions_onehot.reshape(bt, ACT_FLAT)

    if bt <= tile_bt:
        tile = bt                           # single block == full array dims (exempt)
    else:
        tile = _round_up(tile_bt, 128)      # lane-dense (2, tile) output stores
    # Last block may be partial: rows are independent, so garbage tail reads are
    # harmless and out-of-bounds tail writes are dropped.  (Would NOT be safe if a
    # cross-row reduction were ever added.)
    num_tiles = pl.cdiv(bt, tile)

    row_spec = lambda width: pl.BlockSpec((tile, width), lambda i: (i, 0))
    resident = lambda p: pl.BlockSpec(p.shape, lambda i: (0, 0))   # VMEM-resident params
    out_spec = pl.BlockSpec((2, tile), lambda i: (0, i))           # lane-dense output

    nbytes = lambda a: int(a.size) * a.dtype.itemsize
    bytes_accessed = (nbytes(hidden) + nbytes(actions) + nbytes(states)
                      + 2 * bt * 4 + sum(nbytes(p) for p in kparams))
    cost = pl.CostEstimate(flops=_FLOPS_PER_ROW * bt, transcendentals=0,
                           bytes_accessed=bytes_accessed)

    dim_sem = (pltpu.CORE_PARALLEL if core_parallel else pltpu.PARALLEL,)

    qv = pl.pallas_call(
        qtran_kernel,
        out_shape=jax.ShapeDtypeStruct((2, bt), jnp.float32),
        grid=(num_tiles,),
        in_specs=[row_spec(HID_FLAT), row_spec(ACT_FLAT), row_spec(STATE_DIM)]
                 + [resident(p) for p in kparams],
        out_specs=out_spec,
        compiler_params=pltpu.CompilerParams(dimension_semantics=dim_sem),
        cost_estimate=cost,
    )(hidden, actions, states, *kparams)

    q_out = qv[0].reshape(bt, 1)
    v_out = qv[1].reshape(bt, 1)
    return q_out, v_out


# ---------------- pure-JAX reference (matches the torch module) ----------------
def qtran_reference(params, state, hidden_states, actions_onehot):
    (ae_w1, ae_b1, ae_w2, ae_b2,
     q_w1, q_b1, q_w2, q_b2, q_w3, q_b3,
     v_w1, v_b1, v_w2, v_b2, v_w3, v_b3) = params
    bs, ts = state.shape[0], state.shape[1]
    bt = bs * ts
    states = state.reshape(bt, STATE_DIM)
    hidden = hidden_states.reshape(bt, N_AGENTS, HIDDEN_DIM)
    actions = actions_onehot.reshape(bt, N_AGENTS, N_ACTIONS)
    x = jnp.concatenate([hidden, actions], axis=-1).reshape(bt * N_AGENTS, AE_DIM)
    h = jnp.maximum(x @ ae_w1 + ae_b1, 0.0)
    enc = (h @ ae_w2 + ae_b2).reshape(bt, N_AGENTS, AE_DIM).sum(axis=1)
    q_in = jnp.concatenate([states, enc], axis=-1)
    h1 = jnp.maximum(q_in @ q_w1 + q_b1, 0.0)
    h2 = jnp.maximum(h1 @ q_w2 + q_b2, 0.0)
    q_out = h2 @ q_w3 + q_b3
    g1 = jnp.maximum(states @ v_w1 + v_b1, 0.0)
    g2 = jnp.maximum(g1 @ v_w2 + v_b2, 0.0)
    v_out = g2 @ v_w3 + v_b3
    return q_out, v_out


if __name__ == "__main__":
    bs, ts = 2, 8
    key = jax.random.PRNGKey(0)
    k_params, k_state, k_hidden, k_act = jax.random.split(key, 4)

    params = make_params(k_params)
    state = jax.random.normal(k_state, (bs, ts, STATE_DIM), jnp.float32)
    hidden_states = jax.random.normal(k_hidden, (bs, ts, N_AGENTS, HIDDEN_DIM), jnp.float32)
    action_ids = jax.random.randint(k_act, (bs, ts, N_AGENTS), 0, N_ACTIONS)
    actions_onehot = jax.nn.one_hot(action_ids, N_ACTIONS, dtype=jnp.float32)

    q_ref, v_ref = qtran_reference(params, state, hidden_states, actions_onehot)

    # 1) fp32 matmul path: strict check against the module reference.
    kparams32 = prepare_kernel_params(params, matmul_dtype=jnp.float32)
    q32, v32 = qtran_forward(kparams32, state, hidden_states, actions_onehot)
    q32 = jax.block_until_ready(q32)
    v32 = jax.block_until_ready(v32)
    assert q32.shape == (bs * ts, 1) and v32.shape == (bs * ts, 1)
    assert jnp.allclose(q32, q_ref, atol=1e-2, rtol=1e-2)
    assert jnp.allclose(v32, v_ref, atol=1e-2, rtol=1e-2)

    # 2) bf16 matmul-operand path (default / fast): looser tolerance vs the f32 reference.
    kparams16 = prepare_kernel_params(params, matmul_dtype=jnp.bfloat16)
    q16, v16 = qtran_forward(kparams16, state, hidden_states, actions_onehot)
    q16 = jax.block_until_ready(q16)
    v16 = jax.block_until_ready(v16)
    assert q16.shape == (bs * ts, 1) and v16.shape == (bs * ts, 1)
    assert jnp.allclose(q16, q_ref, atol=5e-2, rtol=5e-2)
    assert jnp.allclose(v16, v_ref, atol=5e-2, rtol=5e-2)

    print("KERNEL_OK")
</pallas_src>

<mosaic_0001>
module attributes {stable_mosaic.version = 11 : i64} {
  func.func @qtran_kernel(%arg0: i32, %arg1: memref<16x128xf32, #tpu.memory_space<vmem>>, %arg2: memref<16x32xf32, #tpu.memory_space<vmem>>, %arg3: memref<16x32xf32, #tpu.memory_space<vmem>>, %arg4: memref<128x160xf32, #tpu.memory_space<vmem>>, %arg5: memref<32x160xf32, #tpu.memory_space<vmem>>, %arg6: memref<160x40xf32, #tpu.memory_space<vmem>>, %arg7: memref<32x64xf32, #tpu.memory_space<vmem>>, %arg8: memref<40x64xf32, #tpu.memory_space<vmem>>, %arg9: memref<64x64xf32, #tpu.memory_space<vmem>>, %arg10: memref<2x64xf32, #tpu.memory_space<vmem>>, %arg11: memref<1x640xf32, #tpu.memory_space<vmem>>, %arg12: memref<2x1xf32, #tpu.memory_space<vmem>>, %arg13: memref<2x16xf32, #tpu.memory_space<vmem>>) attributes {dimension_semantics = [#tpu.dimension_semantics<parallel>], iteration_bounds = array<i64: 1>, scalar_prefetch = 0 : i64, scratch_operands = 0 : i64, tpu.core_type = #tpu.core_type<tc>, window_params = [{transform_indices = @transform_0, window_bounds = array<i64: 16, 128>}, {transform_indices = @transform_1, window_bounds = array<i64: 16, 32>}, {transform_indices = @transform_2, window_bounds = array<i64: 16, 32>}, {pipeline_mode = #tpu.pipeline_mode<synchronous>, transform_indices = @transform_3, window_bounds = array<i64: 128, 160>}, {pipeline_mode = #tpu.pipeline_mode<synchronous>, transform_indices = @transform_4, window_bounds = array<i64: 32, 160>}, {pipeline_mode = #tpu.pipeline_mode<synchronous>, transform_indices = @transform_5, window_bounds = array<i64: 160, 40>}, {pipeline_mode = #tpu.pipeline_mode<synchronous>, transform_indices = @transform_6, window_bounds = array<i64: 32, 64>}, {pipeline_mode = #tpu.pipeline_mode<synchronous>, transform_indices = @transform_7, window_bounds = array<i64: 40, 64>}, {pipeline_mode = #tpu.pipeline_mode<synchronous>, transform_indices = @transform_8, window_bounds = array<i64: 64, 64>}, {pipeline_mode = #tpu.pipeline_mode<synchronous>, transform_indices = @transform_9, window_bounds = array<i64: 2, 64>}, {pipeline_mode = #tpu.pipeline_mode<synchronous>, transform_indices = @transform_10, window_bounds = array<i64: 1, 640>}, {pipeline_mode = #tpu.pipeline_mode<synchronous>, transform_indices = @transform_11, window_bounds = array<i64: 2, 1>}, {transform_indices = @transform_12, window_bounds = array<i64: 2, 16>}]} {
    %c0 = arith.constant 0 : index
    %c0_0 = arith.constant 0 : index
    %0 = vector.load %arg1[%c0, %c0_0] : memref<16x128xf32, #tpu.memory_space<vmem>>, vector<16x128xf32>
    %c0_1 = arith.constant 0 : index
    %c0_2 = arith.constant 0 : index
    %1 = vector.load %arg2[%c0_1, %c0_2] : memref<16x32xf32, #tpu.memory_space<vmem>>, vector<16x32xf32>
    %c0_3 = arith.constant 0 : index
    %c0_4 = arith.constant 0 : index
    %2 = vector.load %arg3[%c0_3, %c0_4] : memref<16x32xf32, #tpu.memory_space<vmem>>, vector<16x32xf32>
    %c0_5 = arith.constant 0 : index
    %c0_6 = arith.constant 0 : index
    %3 = vector.load %arg11[%c0_5, %c0_6] : memref<1x640xf32, #tpu.memory_space<vmem>>, vector<1x160xf32>
    %c0_7 = arith.constant 0 : index
    %c256 = arith.constant 256 : index
    %4 = vector.load %arg11[%c0_7, %c256] : memref<1x640xf32, #tpu.memory_space<vmem>>, vector<1x40xf32>
    %c0_8 = arith.constant 0 : index
    %c384 = arith.constant 384 : index
    %5 = vector.load %arg11[%c0_8, %c384] : memref<1x640xf32, #tpu.memory_space<vmem>>, vector<1x64xf32>
    %c0_9 = arith.constant 0 : index
    %c512 = arith.constant 512 : index
    %6 = vector.load %arg11[%c0_9, %c512] : memref<1x640xf32, #tpu.memory_space<vmem>>, vector<1x64xf32>
    %c0_10 = arith.constant 0 : index
    %c0_11 = arith.constant 0 : index
    %7 = vector.load %arg4[%c0_10, %c0_11] : memref<128x160xf32, #tpu.memory_space<vmem>>, vector<128x160xf32>
    %cst = arith.constant dense<0.000000e+00> : vector<16x160xf32>
    %8 = tpu.matmul %0, %7, %cst {dimension_numbers = #tpu.dot_dimension_numbers<[1], [0], [0], [1], [0, 0, 1, 1], [], []>} : vector<16x128xf32>, vector<128x160xf32>, vector<16x160xf32> -> vector<16x160xf32>
    %c0_12 = arith.constant 0 : index
    %c0_13 = arith.constant 0 : index
    %9 = vector.load %arg5[%c0_12, %c0_13] : memref<32x160xf32, #tpu.memory_space<vmem>>, vector<32x160xf32>
    %cst_14 = arith.constant dense<0.000000e+00> : vector<16x160xf32>
    %10 = tpu.matmul %1, %9, %cst_14 {dimension_numbers = #tpu.dot_dimension_numbers<[1], [0], [0], [1], [0, 0, 1, 1], [], []>} : vector<16x32xf32>, vector<32x160xf32>, vector<16x160xf32> -> vector<16x160xf32>
    %11 = arith.addf %8, %10 : vector<16x160xf32>
    %12 = vector.broadcast %3 : vector<1x160xf32> to vector<16x160xf32>
    %13 = arith.addf %11, %12 : vector<16x160xf32>
    %cst_15 = arith.constant 0.000000e+00 : f32
    %14 = vector.broadcast %cst_15 : f32 to vector<16x160xf32>
    %15 = arith.maximumf %13, %14 : vector<16x160xf32>
    %c0_16 = arith.constant 0 : index
    %c0_17 = arith.constant 0 : index
    %16 = vector.load %arg6[%c0_16, %c0_17] : memref<160x40xf32, #tpu.memory_space<vmem>>, vector<160x40xf32>
    %cst_18 = arith.constant dense<0.000000e+00> : vector<16x40xf32>
    %17 = tpu.matmul %15, %16, %cst_18 {dimension_numbers = #tpu.dot_dimension_numbers<[1], [0], [0], [1], [0, 0, 1, 1], [], []>} : vector<16x160xf32>, vector<160x40xf32>, vector<16x40xf32> -> vector<16x40xf32>
    %18 = vector.broadcast %4 : vector<1x40xf32> to vector<16x40xf32>
    %19 = arith.addf %17, %18 : vector<16x40xf32>
    %c0_19 = arith.constant 0 : index
    %c0_20 = arith.constant 0 : index
    %20 = vector.load %arg7[%c0_19, %c0_20] : memref<32x64xf32, #tpu.memory_space<vmem>>, vector<32x64xf32>
    %cst_21 = arith.constant dense<0.000000e+00> : vector<16x64xf32>
    %21 = tpu.matmul %2, %20, %cst_21 {dimension_numbers = #tpu.dot_dimension_numbers<[1], [0], [0], [1], [0, 0, 1, 1], [], []>} : vector<16x32xf32>, vector<32x64xf32>, vector<16x64xf32> -> vector<16x64xf32>
    %c0_22 = arith.constant 0 : index
    %c0_23 = arith.constant 0 : index
    %22 = vector.load %arg8[%c0_22, %c0_23] : memref<40x64xf32, #tpu.memory_space<vmem>>, vector<40x64xf32>
    %cst_24 = arith.constant dense<0.000000e+00> : vector<16x64xf32>
    %23 = tpu.matmul %19, %22, %cst_24 {dimension_numbers = #tpu.dot_dimension_numbers<[1], [0], [0], [1], [0, 0, 1, 1], [], []>} : vector<16x40xf32>, vector<40x64xf32>, vector<16x64xf32> -> vector<16x64xf32>
    %24 = arith.addf %21, %23 : vector<16x64xf32>
    %25 = vector.broadcast %5 : vector<1x64xf32> to vector<16x64xf32>
    %26 = arith.addf %24, %25 : vector<16x64xf32>
    %cst_25 = arith.constant 0.000000e+00 : f32
    %27 = vector.broadcast %cst_25 : f32 to vector<16x64xf32>
    %28 = arith.maximumf %26, %27 : vector<16x64xf32>
    %c0_26 = arith.constant 0 : index
    %c0_27 = arith.constant 0 : index
    %29 = vector.load %arg9[%c0_26, %c0_27] : memref<64x64xf32, #tpu.memory_space<vmem>>, vector<64x64xf32>
    %cst_28 = arith.constant dense<0.000000e+00> : vector<16x64xf32>
    %30 = tpu.matmul %28, %29, %cst_28 {dimension_numbers = #tpu.dot_dimension_numbers<[1], [0], [0], [1], [0, 0, 1, 1], [], []>} : vector<16x64xf32>, vector<64x64xf32>, vector<16x64xf32> -> vector<16x64xf32>
    %31 = vector.broadcast %6 : vector<1x64xf32> to vector<16x64xf32>
    %32 = arith.addf %30, %31 : vector<16x64xf32>
    %cst_29 = arith.constant 0.000000e+00 : f32
    %33 = vector.broadcast %cst_29 : f32 to vector<16x64xf32>
    %34 = arith.maximumf %32, %33 : vector<16x64xf32>
    %c0_30 = arith.constant 0 : index
    %c0_31 = arith.constant 0 : index
    %35 = vector.load %arg10[%c0_30, %c0_31] : memref<2x64xf32, #tpu.memory_space<vmem>>, vector<2x64xf32>
    %cst_32 = arith.constant dense<0.000000e+00> : vector<2x16xf32>
    %36 = tpu.matmul %35, %34, %cst_32 {dimension_numbers = #tpu.dot_dimension_numbers<[1], [1], [0], [0], [0, 0, 1, 0], [], []>} : vector<2x64xf32>, vector<16x64xf32>, vector<2x16xf32> -> vector<2x16xf32>
    %c0_33 = arith.constant 0 : index
    %c0_34 = arith.constant 0 : index
    %37 = vector.load %arg12[%c0_33, %c0_34] : memref<2x1xf32, #tpu.memory_space<vmem>>, vector<2x1xf32>
    %38 = vector.broadcast %37 : vector<2x1xf32> to vector<2x16xf32>
    %39 = arith.addf %36, %38 : vector<2x16xf32>
    %c0_35 = arith.constant 0 : index
    %c0_36 = arith.constant 0 : index
    %40 = vector.load %arg13[%c0_35, %c0_36] : memref<2x16xf32, #tpu.memory_space<vmem>>, vector<2x16xf32>
    tpu.vector_store %arg13[%c0_35, %c0_36], %39 {strides = array<i32>} : memref<2x16xf32, #tpu.memory_space<vmem>>, vector<2x16xf32>,
    return
  }
  func.func @transform_0(%arg0: i32) -> (i32, i32) {
    %c0_i32 = arith.constant 0 : i32
    %c0_i32_0 = arith.constant 0 : i32
    return %arg0, %c0_i32 : i32, i32
  }
  func.func @transform_1(%arg0: i32) -> (i32, i32) {
    %c0_i32 = arith.constant 0 : i32
    %c0_i32_0 = arith.constant 0 : i32
    return %arg0, %c0_i32 : i32, i32
  }
  func.func @transform_2(%arg0: i32) -> (i32, i32) {
    %c0_i32 = arith.constant 0 : i32
    %c0_i32_0 = arith.constant 0 : i32
    return %arg0, %c0_i32 : i32, i32
  }
  func.func @transform_3(%arg0: i32) -> (i32, i32) {
    %c0_i32 = arith.constant 0 : i32
    %c0_i32_0 = arith.constant 0 : i32
    %c0_i32_1 = arith.constant 0 : i32
    return %c0_i32, %c0_i32_0 : i32, i32
  }
  func.func @transform_4(%arg0: i32) -> (i32, i32) {
    %c0_i32 = arith.constant 0 : i32
    %c0_i32_0 = arith.constant 0 : i32
    %c0_i32_1 = arith.constant 0 : i32
    return %c0_i32, %c0_i32_0 : i32, i32
  }
  func.func @transform_5(%arg0: i32) -> (i32, i32) {
    %c0_i32 = arith.constant 0 : i32
    %c0_i32_0 = arith.constant 0 : i32
    %c0_i32_1 = arith.constant 0 : i32
    return %c0_i32, %c0_i32_0 : i32, i32
  }
  func.func @transform_6(%arg0: i32) -> (i32, i32) {
    %c0_i32 = arith.constant 0 : i32
    %c0_i32_0 = arith.constant 0 : i32
    %c0_i32_1 = arith.constant 0 : i32
    return %c0_i32, %c0_i32_0 : i32, i32
  }
  func.func @transform_7(%arg0: i32) -> (i32, i32) {
    %c0_i32 = arith.constant 0 : i32
    %c0_i32_0 = arith.constant 0 : i32
    %c0_i32_1 = arith.constant 0 : i32
    return %c0_i32, %c0_i32_0 : i32, i32
  }
  func.func @transform_8(%arg0: i32) -> (i32, i32) {
    %c0_i32 = arith.constant 0 : i32
    %c0_i32_0 = arith.constant 0 : i32
    %c0_i32_1 = arith.constant 0 : i32
    return %c0_i32, %c0_i32_0 : i32, i32
  }
  func.func @transform_9(%arg0: i32) -> (i32, i32) {
    %c0_i32 = arith.constant 0 : i32
    %c0_i32_0 = arith.constant 0 : i32
    %c0_i32_1 = arith.constant 0 : i32
    return %c0_i32, %c0_i32_0 : i32, i32
  }
  func.func @transform_10(%arg0: i32) -> (i32, i32) {
    %c0_i32 = arith.constant 0 : i32
    %c0_i32_0 = arith.constant 0 : i32
    %c0_i32_1 = arith.constant 0 : i32
    return %c0_i32, %c0_i32_0 : i32, i32
  }
  func.func @transform_11(%arg0: i32) -> (i32, i32) {
    %c0_i32 = arith.constant 0 : i32
    %c0_i32_0 = arith.constant 0 : i32
    %c0_i32_1 = arith.constant 0 : i32
    return %c0_i32, %c0_i32_0 : i32, i32
  }
  func.func @transform_12(%arg0: i32) -> (i32, i32) {
    %c0_i32 = arith.constant 0 : i32
    %c0_i32_0 = arith.constant 0 : i32
    return %c0_i32, %arg0 : i32, i32
  }
}

</mosaic_0001>

<llo_original>
// kernel: tpu_custom_call.1
$region0: #{tpu_custom_call.1}
  #allocation0 [shape = 'u32[]', space=smem, size = 0x4, offset = 0x4, fixed_abs, tag = 'smem constant byte address 0x4 - core index']
  #allocation1 [shape = 'u32[144,128]{1,0:T(1,128)}', space=vmem, size = 0x12000, scoped, tag = 'internal scratch']
  %s0 = inlined_call_operand.vmem [shape: f32[16,128], index: 0, kind: input, shape index: {}]
  %s1 = inlined_call_operand.vmem [shape: f32[16,32], index: 1, kind: input, shape index: {}]
  %s2 = inlined_call_operand.vmem [shape: f32[16,32], index: 2, kind: input, shape index: {}]
  %s3 = inlined_call_operand.vmem [shape: f32[128,160], index: 3, kind: input, shape index: {}]
  %s4 = inlined_call_operand.vmem [shape: f32[32,160], index: 4, kind: input, shape index: {}]
  %s5 = inlined_call_operand.vmem [shape: f32[160,40], index: 5, kind: input, shape index: {}]
  %s6 = inlined_call_operand.vmem [shape: f32[32,64], index: 6, kind: input, shape index: {}]
  %s7 = inlined_call_operand.vmem [shape: f32[40,64], index: 7, kind: input, shape index: {}]
  %s8 = inlined_call_operand.vmem [shape: f32[64,64], index: 8, kind: input, shape index: {}]
  %s9 = inlined_call_operand.vmem [shape: f32[2,64], index: 9, kind: input, shape index: {}]
  %s10 = inlined_call_operand.vmem [shape: f32[1,640], index: 10, kind: input, shape index: {}]
  %s11 = inlined_call_operand.vmem [shape: f32[2,1], index: 11, kind: input, shape index: {}]
  %s12 = inlined_call_operand.hbm [shape: f32[2,16], index: 12, kind: output, shape index: {}]
  %s13 = sld [smem:[#allocation0]]
  $region58: #{tpu_custom_call.1} parent=0
    _
  %s15 = ssub.s32 1, %s13
  %s16 = scalar_select 0, %s15, %s13
  $region1: #{tpu_custom_call.1} parent=0
    #allocation2 [shape = 'u8[1024]{0}', space=vmem, size = 0x400, scoped, tag = 'output window, operand 0, single buffered']
    #allocation3 [shape = 's32[1]{0}', space=sflag, size = 0x4, scoped, tag = 'scoped memory for tpu_custom_call.1']
    %17 = vsyncpa [#allocation3], 0
    // Predicated region
    $region2: #{tpu_custom_call.1} parent=1 // pred_check
      _
    $region3: #{tpu_custom_call.1} parent=1 // pred_check_branch
      %19 = sbr.rel (0) target = $region5
    $region4: #{tpu_custom_call.1} parent=1 // pred_region
      _
    $region5: #{tpu_custom_call.1} parent=1 // pred_fallthru
      _
    // Predicated region
    $region6: #{tpu_custom_call.1} parent=1 // pred_check
      _
    $region7: #{tpu_custom_call.1} parent=1 // pred_check_branch
      %21 = sbr.rel (0) target = $region9
    $region8: #{tpu_custom_call.1} parent=1 // pred_region
      _
    $region9: #{tpu_custom_call.1} parent=1 // pred_fallthru
      _
    // Predicated region
    $region10: #{tpu_custom_call.1} parent=1 // pred_check
      _
    $region11: #{tpu_custom_call.1} parent=1 // pred_check_branch
      %23 = sbr.rel (0) target = $region13
    $region12: #{tpu_custom_call.1} parent=1 // pred_region
      _
    $region13: #{tpu_custom_call.1} parent=1 // pred_fallthru
      _
    // Predicated region
    $region14: #{tpu_custom_call.1} parent=1 // pred_check
      _
    $region15: #{tpu_custom_call.1} parent=1 // pred_check_branch
      %25 = sbr.rel (0) target = $region17
    $region16: #{tpu_custom_call.1} parent=1 // pred_region
      _
    $region17: #{tpu_custom_call.1} parent=1 // pred_fallthru
      _
    // Predicated region
    $region18: #{tpu_custom_call.1} parent=1 // pred_check
      _
    $region19: #{tpu_custom_call.1} parent=1 // pred_check_branch
      %27 = sbr.rel (0) target = $region21
    $region20: #{tpu_custom_call.1} parent=1 // pred_region
      _
    $region21: #{tpu_custom_call.1} parent=1 // pred_fallthru
      _
    // Predicated region
    $region22: #{tpu_custom_call.1} parent=1 // pred_check
      _
    $region23: #{tpu_custom_call.1} parent=1 // pred_check_branch
      %29 = sbr.rel (0) target = $region25
    $region24: #{tpu_custom_call.1} parent=1 // pred_region
      _
    $region25: #{tpu_custom_call.1} parent=1 // pred_fallthru
      _
    // Predicated region
    $region26: #{tpu_custom_call.1} parent=1 // pred_check
      _
    $region27: #{tpu_custom_call.1} parent=1 // pred_check_branch
      %31 = sbr.rel (0) target = $region29
    $region28: #{tpu_custom_call.1} parent=1 // pred_region
      _
    $region29: #{tpu_custom_call.1} parent=1 // pred_fallthru
      _
    // Predicated region
    $region30: #{tpu_custom_call.1} parent=1 // pred_check
      _
    $region31: #{tpu_custom_call.1} parent=1 // pred_check_branch
      %33 = sbr.rel (0) target = $region33
    $region32: #{tpu_custom_call.1} parent=1 // pred_region
      _
    $region33: #{tpu_custom_call.1} parent=1 // pred_fallthru
      _
    // Predicated region
    $region34: #{tpu_custom_call.1} parent=1 // pred_check
      _
    $region35: #{tpu_custom_call.1} parent=1 // pred_check_branch
      %35 = sbr.rel (0) target = $region37
    $region36: #{tpu_custom_call.1} parent=1 // pred_region
      _
    $region37: #{tpu_custom_call.1} parent=1 // pred_fallthru
      _
    // Predicated region
    $region38: #{tpu_custom_call.1} parent=1 // pred_check
      _
    $region39: #{tpu_custom_call.1} parent=1 // pred_check_branch
      %37 = sbr.rel (0) target = $region41
    $region40: #{tpu_custom_call.1} parent=1 // pred_region
      _
    $region41: #{tpu_custom_call.1} parent=1 // pred_fallthru
      _
    // Predicated region
    $region42: #{tpu_custom_call.1} parent=1 // pred_check
      _
    $region43: #{tpu_custom_call.1} parent=1 // pred_check_branch
      %39 = sbr.rel (0) target = $region45
    $region44: #{tpu_custom_call.1} parent=1 // pred_region
      _
    $region45: #{tpu_custom_call.1} parent=1 // pred_fallthru
      _
    // Predicated region
    $region46: #{tpu_custom_call.1} parent=1 // pred_check
      _
    $region47: #{tpu_custom_call.1} parent=1 // pred_check_branch
      %41 = sbr.rel (0) target = $region49
    $region48: #{tpu_custom_call.1} parent=1 // pred_region
      _
    $region49: #{tpu_custom_call.1} parent=1 // pred_fallthru
      _
    %v42 = vld [vmem:[%s0] sm:$0xff]
    %v43 = vld [vmem:[%s0 + $0x8] sm:$0xff]
    %v44 = vld [vmem:[%s1] sm:$0xff]
    %v45 = vld [vmem:[%s1 + $0x8] sm:$0xff]
    %v46 = vld [vmem:[%s2] sm:$0xff]
    %v47 = vld [vmem:[%s2 + $0x8] sm:$0xff]
    %v48 = vld [vmem:[%s10] sm:$0x3]
    %v49 = vld [vmem:[%s10 + $0x2] sm:$0x1]
    %v50 = vld [vmem:[%s10 + $0x3] sm:$0x1]
    %v51 = vld [vmem:[%s10 + $0x4] sm:$0x1]
    %v52 = vld [vmem:[%s3] sm:$0xff]
    %v53 = vld [vmem:[%s3 + $0x8] sm:$0xff]
    %v54 = vld [vmem:[%s3 + $0x10] sm:$0xff]
    %v55 = vld [vmem:[%s3 + $0x18] sm:$0xff]
    %v56 = vld [vmem:[%s3 + $0x20] sm:$0xff]
    %v57 = vld [vmem:[%s3 + $0x28] sm:$0xff]
    %v58 = vld [vmem:[%s3 + $0x30] sm:$0xff]
    %v59 = vld [vmem:[%s3 + $0x38] sm:$0xff]
    %v60 = vld [vmem:[%s3 + $0x40] sm:$0xff]
    %v61 = vld [vmem:[%s3 + $0x48] sm:$0xff]
    %v62 = vld [vmem:[%s3 + $0x50] sm:$0xff]
    %v63 = vld [vmem:[%s3 + $0x58] sm:$0xff]
    %v64 = vld [vmem:[%s3 + $0x60] sm:$0xff]
    %v65 = vld [vmem:[%s3 + $0x68] sm:$0xff]
    %v66 = vld [vmem:[%s3 + $0x70] sm:$0xff]
    %v67 = vld [vmem:[%s3 + $0x78] sm:$0xff]
    %v68 = vld [vmem:[%s3 + $0x80] sm:$0xff]
    %v69 = vld [vmem:[%s3 + $0x88] sm:$0xff]
    %v70 = vld [vmem:[%s3 + $0x90] sm:$0xff]
    %v71 = vld [vmem:[%s3 + $0x98] sm:$0xff]
    %v72 = vld [vmem:[%s3 + $0xa0] sm:$0xff]
    %v73 = vld [vmem:[%s3 + $0xa8] sm:$0xff]
    %v74 = vld [vmem:[%s3 + $0xb0] sm:$0xff]
    %v75 = vld [vmem:[%s3 + $0xb8] sm:$0xff]
    %v76 = vld [vmem:[%s3 + $0xc0] sm:$0xff]
    %v77 = vld [vmem:[%s3 + $0xc8] sm:$0xff]
    %v78 = vld [vmem:[%s3 + $0xd0] sm:$0xff]
    %v79 = vld [vmem:[%s3 + $0xd8] sm:$0xff]
    %v80 = vld [vmem:[%s3 + $0xe0] sm:$0xff]
    %v81 = vld [vmem:[%s3 + $0xe8] sm:$0xff]
    %v82 = vld [vmem:[%s3 + $0xf0] sm:$0xff]
    %v83 = vld [vmem:[%s3 + $0xf8] sm:$0xff]
    %v84 = vld [vmem:[%s4] sm:$0xff]
    %v85 = vld [vmem:[%s4 + $0x8] sm:$0xff]
    %v86 = vld [vmem:[%s4 + $0x10] sm:$0xff]
    %v87 = vld [vmem:[%s4 + $0x18] sm:$0xff]
    %v88 = vld [vmem:[%s4 + $0x20] sm:$0xff]
    %v89 = vld [vmem:[%s4 + $0x28] sm:$0xff]
    %v90 = vld [vmem:[%s4 + $0x30] sm:$0xff]
    %v91 = vld [vmem:[%s4 + $0x38] sm:$0xff]
    %vm92 = vcmask 261120
    %v94 = vsel %vm92, %v44, 0
    %v97 = vsel %vm92, %v45, 0
    %99 = vmatprep.subr.mxu0 %v85
    %100 = vmatpush1.msra.mxu0 %v84
    %101 = vmatprep.subr.mxu0 %v87
    %102 = vmatpush1.msra.mxu0 %v86
    %103 = vmatprep.subr.mxu0 %v89
    %104 = vmatpush1.msra.mxu0 %v88
    %105 = vmatprep.subr.mxu0 %v91
    %106 = vmatpush1.msra.mxu0 %v90
    %107 = vmatprep.subr.mxu0 0.0
    %108 = vmatpush1.msra.mxu0 0.0
    %109 = vmatprep.subr.mxu0 0.0
    %110 = vmatpush1.msra.mxu0 0.0
    %111 = vmatprep.subr.mxu0 0.0
    %112 = vmatpush1.msra.mxu0 0.0
    %113 = vmatprep.subr.mxu0 0.0
    %114 = vmatpush1.msra.mxu0 0.0
    %115 = vmatprep.subr.mxu0 0.0
    %116 = vmatpush1.msra.mxu0 0.0
    %117 = vmatprep.subr.mxu0 0.0
    %118 = vmatpush1.msra.mxu0 0.0
    %119 = vmatprep.subr.mxu0 0.0
    %120 = vmatpush1.msra.mxu0 0.0
    %121 = vmatprep.subr.mxu0 0.0
    %122 = vmatpush1.msra.mxu0 0.0
    %123 = vmatprep.subr.mxu0 0.0
    %124 = vmatpush1.msra.mxu0 0.0
    %125 = vmatprep.subr.mxu0 0.0
    %126 = vmatpush1.msra.mxu0 0.0
    %127 = vmatprep.subr.mxu0 0.0
    %128 = vmatpush1.msra.mxu0 0.0
    %129 = vmatprep.subr.mxu0 0.0
    %130 = vmatpush1.msra.mxu0 0.0
    %131 = vmatprep.subr.mxu0 0.0
    %132 = vmatpush1.msra.mxu0 0.0
    %133 = vmatprep.subr.mxu0 0.0
    %134 = vmatpush1.msra.mxu0 0.0
    %135 = vmatprep.subr.mxu0 0.0
    %136 = vmatpush1.msra.mxu0 0.0
    %137 = vmatprep.subr.mxu0 0.0
    %138 = vmatpush1.msra.mxu0 0.0
    %139 = vmatprep.subr.mxu0 0.0
    %140 = vmatpush1.msra.mxu0 0.0
    %141 = vmatprep.subr.mxu0 0.0
    %142 = vmatpush1.msra.mxu0 0.0
    %143 = vmatprep.subr.mxu0 0.0
    %144 = vmatpush1.msra.mxu0 0.0
    %145 = vmatprep.subr.mxu0 0.0
    %146 = vmatpush1.msra.mxu0 0.0
    %147 = vmatprep.subr.mxu0 0.0
    %148 = vmatpush1.msra.mxu0 0.0
    %149 = vmatprep.subr.mxu0 0.0
    %150 = vmatpush1.msra.mxu0 0.0
    %151 = vmatprep.subr.mxu0 0.0
    %152 = vmatpush1.msra.mxu0 0.0
    %153 = vmatprep.subr.mxu0 0.0
    %154 = vmatpush1.msra.mxu0 0.0
    %155 = vmatprep.subr.mxu0 0.0
    %156 = vmatpush1.msra.mxu0 0.0
    %157 = vmatprep.subr.mxu0 0.0
    %158 = vmatpush1.msra.mxu0 0.0
    %159 = vmatprep.subr.mxu0 0.0
    %160 = vmatpush1.msra.mxu0 0.0
    %161 = vmatprep.subr.mxu0 0.0
    %162 = vmatpush1.msra.mxu0 0.0
    %163 = vmatprep.mubr.f32.mxu0 0.0
    %164 = vmatmul.mubr.f32.gmra.mrb[0].mxu0 %v94
    %v165 = vpop.f32.mrb[0].mxu0
    %v166 = vadd.f32 0.0, %v165
    %v167 = vpop.f32.mrb[0].mxu0
    %v168 = vadd.f32 0.0, %v167
    %169 = vmatprep.mubr.f32.mxu0 0.0
    %170 = vmatmul.mubr.f32.gmra.mrb[0].mxu0 %v97
    %v171 = vpop.f32.mrb[0].mxu0
    %v172 = vadd.f32 0.0, %v171
    %v173 = vpop.f32.mrb[0].mxu0
    %v174 = vadd.f32 0.0, %v173
    %175 = vdwg.mxu0
    %176 = vmatprep.subr.mxu0 %v53
    %177 = vmatpush1.msra.mxu0 %v52
    %178 = vmatprep.subr.mxu0 %v55
    %179 = vmatpush1.msra.mxu0 %v54
    %180 = vmatprep.subr.mxu0 %v57
    %181 = vmatpush1.msra.mxu0 %v56
    %182 = vmatprep.subr.mxu0 %v59
    %183 = vmatpush1.msra.mxu0 %v58
    %184 = vmatprep.subr.mxu0 %v61
    %185 = vmatpush1.msra.mxu0 %v60
    %186 = vmatprep.subr.mxu0 %v63
    %187 = vmatpush1.msra.mxu0 %v62
    %188 = vmatprep.subr.mxu0 %v65
    %189 = vmatpush1.msra.mxu0 %v64
    %190 = vmatprep.subr.mxu0 %v67
    %191 = vmatpush1.msra.mxu0 %v66
    %192 = vmatprep.subr.mxu0 %v69
    %193 = vmatpush1.msra.mxu0 %v68
    %194 = vmatprep.subr.mxu0 %v71
    %195 = vmatpush1.msra.mxu0 %v70
    %196 = vmatprep.subr.mxu0 %v73
    %197 = vmatpush1.msra.mxu0 %v72
    %198 = vmatprep.subr.mxu0 %v75
    %199 = vmatpush1.msra.mxu0 %v74
    %200 = vmatprep.subr.mxu0 %v77
    %201 = vmatpush1.msra.mxu0 %v76
    %202 = vmatprep.subr.mxu0 %v79
    %203 = vmatpush1.msra.mxu0 %v78
    %204 = vmatprep.subr.mxu0 %v81
    %205 = vmatpush1.msra.mxu0 %v80
    %206 = vmatprep.subr.mxu0 %v83
    %207 = vmatpush1.msra.mxu0 %v82
    %208 = vmatprep.subr.mxu0 0.0
    %209 = vmatpush1.msra.mxu0 0.0
    %210 = vmatprep.subr.mxu0 0.0
    %211 = vmatpush1.msra.mxu0 0.0
    %212 = vmatprep.subr.mxu0 0.0
    %213 = vmatpush1.msra.mxu0 0.0
    %214 = vmatprep.subr.mxu0 0.0
    %215 = vmatpush1.msra.mxu0 0.0
    %216 = vmatprep.subr.mxu0 0.0
    %217 = vmatpush1.msra.mxu0 0.0
    %218 = vmatprep.subr.mxu0 0.0
    %219 = vmatpush1.msra.mxu0 0.0
    %220 = vmatprep.subr.mxu0 0.0
    %221 = vmatpush1.msra.mxu0 0.0
    %222 = vmatprep.subr.mxu0 0.0
    %223 = vmatpush1.msra.mxu0 0.0
    %224 = vmatprep.subr.mxu0 0.0
    %225 = vmatpush1.msra.mxu0 0.0
    %226 = vmatprep.subr.mxu0 0.0
    %227 = vmatpush1.msra.mxu0 0.0
    %228 = vmatprep.subr.mxu0 0.0
    %229 = vmatpush1.msra.mxu0 0.0
    %230 = vmatprep.subr.mxu0 0.0
    %231 = vmatpush1.msra.mxu0 0.0
    %232 = vmatprep.subr.mxu0 0.0
    %233 = vmatpush1.msra.mxu0 0.0
    %234 = vmatprep.subr.mxu0 0.0
    %235 = vmatpush1.msra.mxu0 0.0
    %236 = vmatprep.subr.mxu0 0.0
    %237 = vmatpush1.msra.mxu0 0.0
    %238 = vmatprep.subr.mxu0 0.0
    %239 = vmatpush1.msra.mxu0 0.0
    %240 = vmatprep.mubr.f32.mxu0 0.0
    %241 = vmatmul.mubr.f32.gmra.mrb[0].mxu0 %v42
    %v242 = vpop.f32.mrb[0].mxu0
    %v243 = vadd.f32 %v166, %v242
    %v244 = vpop.f32.mrb[0].mxu0
    %v245 = vadd.f32 %v168, %v244
    %246 = vmatprep.mubr.f32.mxu0 0.0
    %247 = vmatmul.mubr.f32.gmra.mrb[0].mxu0 %v43
    %v248 = vpop.f32.mrb[0].mxu0
    %v249 = vadd.f32 %v172, %v248
    %v250 = vpop.f32.mrb[0].mxu0
    %v251 = vadd.f32 %v174, %v250
    %252 = vdwg.mxu0
    %v254 = vlaneseq
    %v255 = vshrl.u32 %v254, 7
    %v256 = vsub.s32 0, %v255
    %v257 = vrot.slane %v48, %v256
    %v258 = vlaneseq
    %v259 = vshrl.u32 %v258, 7
    %v260 = vsub.s32 1, %v259
    %v261 = vrot.slane %v48, %v260
    %v264 = vadd.f32 %v243, %v257
    %v265 = vadd.f32 %v245, %v261
    %v266 = vadd.f32 %v249, %v257
    %v267 = vadd.f32 %v251, %v261
    %v268 = vmax.f32 %v264, 0.0
    %v269 = vmax.f32 %v265, 0.0
    %v270 = vmax.f32 %v266, 0.0
    %v271 = vmax.f32 %v267, 0.0
    %v272 = vld [vmem:[%s5] sm:$0xff]
    %v273 = vld [vmem:[%s5 + $0x8] sm:$0xff]
    %v274 = vld [vmem:[%s5 + $0x10] sm:$0xff]
    %v275 = vld [vmem:[%s5 + $0x18] sm:$0xff]
    %v276 = vld [vmem:[%s5 + $0x20] sm:$0xff]
    %v277 = vld [vmem:[%s5 + $0x28] sm:$0xff]
    %v278 = vld [vmem:[%s5 + $0x30] sm:$0xff]
    %v279 = vld [vmem:[%s5 + $0x38] sm:$0xff]
    %v280 = vld [vmem:[%s5 + $0x40] sm:$0xff]
    %v281 = vld [vmem:[%s5 + $0x48] sm:$0xff]
    %v282 = vld [vmem:[%s5 + $0x50] sm:$0xff]
    %v283 = vld [vmem:[%s5 + $0x58] sm:$0xff]
    %v284 = vld [vmem:[%s5 + $0x60] sm:$0xff]
    %v285 = vld [vmem:[%s5 + $0x68] sm:$0xff]
    %v286 = vld [vmem:[%s5 + $0x70] sm:$0xff]
    %v287 = vld [vmem:[%s5 + $0x78] sm:$0xff]
    %v288 = vld [vmem:[%s5 + $0x80] sm:$0xff]
    %v289 = vld [vmem:[%s5 + $0x88] sm:$0xff]
    %v290 = vld [vmem:[%s5 + $0x90] sm:$0xff]
    %v291 = vld [vmem:[%s5 + $0x98] sm:$0xff]
    %v293 = vlaneseq
    %v294 = vshrl.u32 %v293, 7
    %v295 = vsub.s32 0, %v294
    %v296 = vrot.slane %v49, %v295
    %v299 = vsel %vm92, %v269, 0
    %v302 = vsel %vm92, %v271, 0
    %304 = vmatprep.subr.mxu0 0.0
    %305 = vmatpush1.msra.mxu0 %v272
    %306 = vmatprep.subr.mxu0 0.0
    %307 = vmatpush1.msra.mxu0 %v273
    %308 = vmatprep.subr.mxu0 0.0
    %309 = vmatpush1.msra.mxu0 %v274
    %310 = vmatprep.subr.mxu0 0.0
    %311 = vmatpush1.msra.mxu0 %v275
    %312 = vmatprep.subr.mxu0 0.0
    %313 = vmatpush1.msra.mxu0 %v276
    %314 = vmatprep.subr.mxu0 0.0
    %315 = vmatpush1.msra.mxu0 %v277
    %316 = vmatprep.subr.mxu0 0.0
    %317 = vmatpush1.msra.mxu0 %v278
    %318 = vmatprep.subr.mxu0 0.0
    %319 = vmatpush1.msra.mxu0 %v279
    %320 = vmatprep.subr.mxu0 0.0
    %321 = vmatpush1.msra.mxu0 %v280
    %322 = vmatprep.subr.mxu0 0.0
    %323 = vmatpush1.msra.mxu0 %v281
    %324 = vmatprep.subr.mxu0 0.0
    %325 = vmatpush1.msra.mxu0 %v282
    %326 = vmatprep.subr.mxu0 0.0
    %327 = vmatpush1.msra.mxu0 %v283
    %328 = vmatprep.subr.mxu0 0.0
    %329 = vmatpush1.msra.mxu0 %v284
    %330 = vmatprep.subr.mxu0 0.0
    %331 = vmatpush1.msra.mxu0 %v285
    %332 = vmatprep.subr.mxu0 0.0
    %333 = vmatpush1.msra.mxu0 %v286
    %334 = vmatprep.subr.mxu0 0.0
    %335 = vmatpush1.msra.mxu0 %v287
    %336 = vmatprep.subr.mxu0 0.0
    %337 = vmatpush1.msra.mxu0 %v288
    %338 = vmatprep.subr.mxu0 0.0
    %339 = vmatpush1.msra.mxu0 %v289
    %340 = vmatprep.subr.mxu0 0.0
    %341 = vmatpush1.msra.mxu0 %v290
    %342 = vmatprep.subr.mxu0 0.0
    %343 = vmatpush1.msra.mxu0 %v291
    %344 = vmatprep.subr.mxu0 0.0
    %345 = vmatpush1.msra.mxu0 0.0
    %346 = vmatprep.subr.mxu0 0.0
    %347 = vmatpush1.msra.mxu0 0.0
    %348 = vmatprep.subr.mxu0 0.0
    %349 = vmatpush1.msra.mxu0 0.0
    %350 = vmatprep.subr.mxu0 0.0
    %351 = vmatpush1.msra.mxu0 0.0
    %352 = vmatprep.subr.mxu0 0.0
    %353 = vmatpush1.msra.mxu0 0.0
    %354 = vmatprep.subr.mxu0 0.0
    %355 = vmatpush1.msra.mxu0 0.0
    %356 = vmatprep.subr.mxu0 0.0
    %357 = vmatpush1.msra.mxu0 0.0
    %358 = vmatprep.subr.mxu0 0.0
    %359 = vmatpush1.msra.mxu0 0.0
    %360 = vmatprep.subr.mxu0 0.0
    %361 = vmatpush1.msra.mxu0 0.0
    %362 = vmatprep.subr.mxu0 0.0
    %363 = vmatpush1.msra.mxu0 0.0
    %364 = vmatprep.subr.mxu0 0.0
    %365 = vmatpush1.msra.mxu0 0.0
    %366 = vmatprep.subr.mxu0 0.0
    %367 = vmatpush1.msra.mxu0 0.0
    %368 = vmatprep.mubr.f32.mxu0 %v299
    %369 = vmatmul.mubr.f32.gmra.mrb[0].mxu0 %v268
    %v370 = vpop.f32.mrb[0].mxu0
    %v371 = vadd.f32 %v296, %v370
    %v372 = vpop.f32.mrb[0].mxu0
    %373 = vmatprep.mubr.f32.mxu0 %v302
    %374 = vmatmul.mubr.f32.gmra.mrb[0].mxu0 %v270
    %v375 = vpop.f32.mrb[0].mxu0
    %v376 = vadd.f32 %v296, %v375
    %v377 = vpop.f32.mrb[0].mxu0
    %378 = vdwg.mxu0
    %v379 = vld [vmem:[%s6] sm:$0xff]
    %v380 = vld [vmem:[%s6 + $0x8] sm:$0xff]
    %v381 = vld [vmem:[%s6 + $0x10] sm:$0xff]
    %v382 = vld [vmem:[%s6 + $0x18] sm:$0xff]
    %v383 = vld [vmem:[%s7] sm:$0xff]
    %v384 = vld [vmem:[%s7 + $0x8] sm:$0xff]
    %v385 = vld [vmem:[%s7 + $0x10] sm:$0xff]
    %v386 = vld [vmem:[%s7 + $0x18] sm:$0xff]
    %v387 = vld [vmem:[%s7 + $0x20] sm:$0xff]
    %vm388 = vcmask 326656
    %v390 = vsel %vm388, %v371, 0
    %v393 = vsel %vm388, %v376, 0
    %395 = vmatprep.subr.mxu0 0.0
    %396 = vmatpush1.msra.mxu0 %v383
    %397 = vmatprep.subr.mxu0 0.0
    %398 = vmatpush1.msra.mxu0 %v384
    %399 = vmatprep.subr.mxu0 0.0
    %400 = vmatpush1.msra.mxu0 %v385
    %401 = vmatprep.subr.mxu0 0.0
    %402 = vmatpush1.msra.mxu0 %v386
    %403 = vmatprep.subr.mxu0 0.0
    %404 = vmatpush1.msra.mxu0 %v387
    %405 = vmatprep.subr.mxu0 0.0
    %406 = vmatpush1.msra.mxu0 0.0
    %407 = vmatprep.subr.mxu0 0.0
    %408 = vmatpush1.msra.mxu0 0.0
    %409 = vmatprep.subr.mxu0 0.0
    %410 = vmatpush1.msra.mxu0 0.0
    %411 = vmatprep.subr.mxu0 0.0
    %412 = vmatpush1.msra.mxu0 0.0
    %413 = vmatprep.subr.mxu0 0.0
    %414 = vmatpush1.msra.mxu0 0.0
    %415 = vmatprep.subr.mxu0 0.0
    %416 = vmatpush1.msra.mxu0 0.0
    %417 = vmatprep.subr.mxu0 0.0
    %418 = vmatpush1.msra.mxu0 0.0
    %419 = vmatprep.subr.mxu0 0.0
    %420 = vmatpush1.msra.mxu0 0.0
    %421 = vmatprep.subr.mxu0 0.0
    %422 = vmatpush1.msra.mxu0 0.0
    %423 = vmatprep.subr.mxu0 0.0
    %424 = vmatpush1.msra.mxu0 0.0
    %425 = vmatprep.subr.mxu0 0.0
    %426 = vmatpush1.msra.mxu0 0.0
    %427 = vmatprep.subr.mxu0 0.0
    %428 = vmatpush1.msra.mxu0 0.0
    %429 = vmatprep.subr.mxu0 0.0
    %430 = vmatpush1.msra.mxu0 0.0
    %431 = vmatprep.subr.mxu0 0.0
    %432 = vmatpush1.msra.mxu0 0.0
    %433 = vmatprep.subr.mxu0 0.0
    %434 = vmatpush1.msra.mxu0 0.0
    %435 = vmatprep.subr.mxu0 0.0
    %436 = vmatpush1.msra.mxu0 0.0
    %437 = vmatprep.subr.mxu0 0.0
    %438 = vmatpush1.msra.mxu0 0.0
    %439 = vmatprep.subr.mxu0 0.0
    %440 = vmatpush1.msra.mxu0 0.0
    %441 = vmatprep.subr.mxu0 0.0
    %442 = vmatpush1.msra.mxu0 0.0
    %443 = vmatprep.subr.mxu0 0.0
    %444 = vmatpush1.msra.mxu0 0.0
    %445 = vmatprep.subr.mxu0 0.0
    %446 = vmatpush1.msra.mxu0 0.0
    %447 = vmatprep.subr.mxu0 0.0
    %448 = vmatpush1.msra.mxu0 0.0
    %449 = vmatprep.subr.mxu0 0.0
    %450 = vmatpush1.msra.mxu0 0.0
    %451 = vmatprep.subr.mxu0 0.0
    %452 = vmatpush1.msra.mxu0 0.0
    %453 = vmatprep.subr.mxu0 0.0
    %454 = vmatpush1.msra.mxu0 0.0
    %455 = vmatprep.subr.mxu0 0.0
    %456 = vmatpush1.msra.mxu0 0.0
    %457 = vmatprep.subr.mxu0 0.0
    %458 = vmatpush1.msra.mxu0 0.0
    %459 = vmatprep.mubr.f32.mxu0 0.0
    %460 = vmatmul.mubr.f32.gmra.mrb[0].mxu0 %v390
    %v461 = vpop.f32.mrb[0].mxu0
    %v462 = vadd.f32 0.0, %v461
    %v463 = vpop.f32.mrb[0].mxu0
    %464 = vmatprep.mubr.f32.mxu0 0.0
    %465 = vmatmul.mubr.f32.gmra.mrb[0].mxu0 %v393
    %v466 = vpop.f32.mrb[0].mxu0
    %v467 = vadd.f32 0.0, %v466
    %v468 = vpop.f32.mrb[0].mxu0
    %469 = vdwg.mxu0
    %v471 = vsel %vm92, %v46, 0
    %v474 = vsel %vm92, %v47, 0
    %476 = vmatprep.subr.mxu0 0.0
    %477 = vmatpush1.msra.mxu0 %v379
    %478 = vmatprep.subr.mxu0 0.0
    %479 = vmatpush1.msra.mxu0 %v380
    %480 = vmatprep.subr.mxu0 0.0
    %481 = vmatpush1.msra.mxu0 %v381
    %482 = vmatprep.subr.mxu0 0.0
    %483 = vmatpush1.msra.mxu0 %v382
    %484 = vmatprep.subr.mxu0 0.0
    %485 = vmatpush1.msra.mxu0 0.0
    %486 = vmatprep.subr.mxu0 0.0
    %487 = vmatpush1.msra.mxu0 0.0
    %488 = vmatprep.subr.mxu0 0.0
    %489 = vmatpush1.msra.mxu0 0.0
    %490 = vmatprep.subr.mxu0 0.0
    %491 = vmatpush1.msra.mxu0 0.0
    %492 = vmatprep.subr.mxu0 0.0
    %493 = vmatpush1.msra.mxu0 0.0
    %494 = vmatprep.subr.mxu0 0.0
    %495 = vmatpush1.msra.mxu0 0.0
    %496 = vmatprep.subr.mxu0 0.0
    %497 = vmatpush1.msra.mxu0 0.0
    %498 = vmatprep.subr.mxu0 0.0
    %499 = vmatpush1.msra.mxu0 0.0
    %500 = vmatprep.subr.mxu0 0.0
    %501 = vmatpush1.msra.mxu0 0.0
    %502 = vmatprep.subr.mxu0 0.0
    %503 = vmatpush1.msra.mxu0 0.0
    %504 = vmatprep.subr.mxu0 0.0
    %505 = vmatpush1.msra.mxu0 0.0
    %506 = vmatprep.subr.mxu0 0.0
    %507 = vmatpush1.msra.mxu0 0.0
    %508 = vmatprep.subr.mxu0 0.0
    %509 = vmatpush1.msra.mxu0 0.0
    %510 = vmatprep.subr.mxu0 0.0
    %511 = vmatpush1.msra.mxu0 0.0
    %512 = vmatprep.subr.mxu0 0.0
    %513 = vmatpush1.msra.mxu0 0.0
    %514 = vmatprep.subr.mxu0 0.0
    %515 = vmatpush1.msra.mxu0 0.0
    %516 = vmatprep.subr.mxu0 0.0
    %517 = vmatpush1.msra.mxu0 0.0
    %518 = vmatprep.subr.mxu0 0.0
    %519 = vmatpush1.msra.mxu0 0.0
    %520 = vmatprep.subr.mxu0 0.0
    %521 = vmatpush1.msra.mxu0 0.0
    %522 = vmatprep.subr.mxu0 0.0
    %523 = vmatpush1.msra.mxu0 0.0
    %524 = vmatprep.subr.mxu0 0.0
    %525 = vmatpush1.msra.mxu0 0.0
    %526 = vmatprep.subr.mxu0 0.0
    %527 = vmatpush1.msra.mxu0 0.0
    %528 = vmatprep.subr.mxu0 0.0
    %529 = vmatpush1.msra.mxu0 0.0
    %530 = vmatprep.subr.mxu0 0.0
    %531 = vmatpush1.msra.mxu0 0.0
    %532 = vmatprep.subr.mxu0 0.0
    %533 = vmatpush1.msra.mxu0 0.0
    %534 = vmatprep.subr.mxu0 0.0
    %535 = vmatpush1.msra.mxu0 0.0
    %536 = vmatprep.subr.mxu0 0.0
    %537 = vmatpush1.msra.mxu0 0.0
    %538 = vmatprep.subr.mxu0 0.0
    %539 = vmatpush1.msra.mxu0 0.0
    %540 = vmatprep.mubr.f32.mxu0 0.0
    %541 = vmatmul.mubr.f32.gmra.mrb[0].mxu0 %v471
    %v542 = vpop.f32.mrb[0].mxu0
    %v543 = vadd.f32 %v462, %v542
    %v544 = vpop.f32.mrb[0].mxu0
    %545 = vmatprep.mubr.f32.mxu0 0.0
    %546 = vmatmul.mubr.f32.gmra.mrb[0].mxu0 %v474
    %v547 = vpop.f32.mrb[0].mxu0
    %v548 = vadd.f32 %v467, %v547
    %v549 = vpop.f32.mrb[0].mxu0
    %550 = vdwg.mxu0
    %v552 = vlaneseq
    %v553 = vshrl.u32 %v552, 7
    %v554 = vsub.s32 0, %v553
    %v555 = vrot.slane %v50, %v554
    %v557 = vadd.f32 %v543, %v555
    %v558 = vadd.f32 %v548, %v555
    %v559 = vmax.f32 %v557, 0.0
    %v560 = vmax.f32 %v558, 0.0
    %v561 = vld [vmem:[%s8] sm:$0xff]
    %v562 = vld [vmem:[%s8 + $0x8] sm:$0xff]
    %v563 = vld [vmem:[%s8 + $0x10] sm:$0xff]
    %v564 = vld [vmem:[%s8 + $0x18] sm:$0xff]
    %v565 = vld [vmem:[%s8 + $0x20] sm:$0xff]
    %v566 = vld [vmem:[%s8 + $0x28] sm:$0xff]
    %v567 = vld [vmem:[%s8 + $0x30] sm:$0xff]
    %v568 = vld [vmem:[%s8 + $0x38] sm:$0xff]
    %v570 = vlaneseq
    %v571 = vshrl.u32 %v570, 7
    %v572 = vsub.s32 0, %v571
    %v573 = vrot.slane %v51, %v572
    %vm575 = vcmask 523264
    %v577 = vsel %vm575, %v559, 0
    %v580 = vsel %vm575, %v560, 0
    %582 = vmatprep.subr.mxu0 0.0
    %583 = vmatpush1.msra.mxu0 %v561
    %584 = vmatprep.subr.mxu0 0.0
    %585 = vmatpush1.msra.mxu0 %v562
    %586 = vmatprep.subr.mxu0 0.0
    %587 = vmatpush1.msra.mxu0 %v563
    %588 = vmatprep.subr.mxu0 0.0
    %589 = vmatpush1.msra.mxu0 %v564
    %590 = vmatprep.subr.mxu0 0.0
    %591 = vmatpush1.msra.mxu0 %v565
    %592 = vmatprep.subr.mxu0 0.0
    %593 = vmatpush1.msra.mxu0 %v566
    %594 = vmatprep.subr.mxu0 0.0
    %595 = vmatpush1.msra.mxu0 %v567
    %596 = vmatprep.subr.mxu0 0.0
    %597 = vmatpush1.msra.mxu0 %v568
    %598 = vmatprep.subr.mxu0 0.0
    %599 = vmatpush1.msra.mxu0 0.0
    %600 = vmatprep.subr.mxu0 0.0
    %601 = vmatpush1.msra.mxu0 0.0
    %602 = vmatprep.subr.mxu0 0.0
    %603 = vmatpush1.msra.mxu0 0.0
    %604 = vmatprep.subr.mxu0 0.0
    %605 = vmatpush1.msra.mxu0 0.0
    %606 = vmatprep.subr.mxu0 0.0
    %607 = vmatpush1.msra.mxu0 0.0
    %608 = vmatprep.subr.mxu0 0.0
    %609 = vmatpush1.msra.mxu0 0.0
    %610 = vmatprep.subr.mxu0 0.0
    %611 = vmatpush1.msra.mxu0 0.0
    %612 = vmatprep.subr.mxu0 0.0
    %613 = vmatpush1.msra.mxu0 0.0
    %614 = vmatprep.subr.mxu0 0.0
    %615 = vmatpush1.msra.mxu0 0.0
    %616 = vmatprep.subr.mxu0 0.0
    %617 = vmatpush1.msra.mxu0 0.0
    %618 = vmatprep.subr.mxu0 0.0
    %619 = vmatpush1.msra.mxu0 0.0
    %620 = vmatprep.subr.mxu0 0.0
    %621 = vmatpush1.msra.mxu0 0.0
    %622 = vmatprep.subr.mxu0 0.0
    %623 = vmatpush1.msra.mxu0 0.0
    %624 = vmatprep.subr.mxu0 0.0
    %625 = vmatpush1.msra.mxu0 0.0
    %626 = vmatprep.subr.mxu0 0.0
    %627 = vmatpush1.msra.mxu0 0.0
    %628 = vmatprep.subr.mxu0 0.0
    %629 = vmatpush1.msra.mxu0 0.0
    %630 = vmatprep.subr.mxu0 0.0
    %631 = vmatpush1.msra.mxu0 0.0
    %632 = vmatprep.subr.mxu0 0.0
    %633 = vmatpush1.msra.mxu0 0.0
    %634 = vmatprep.subr.mxu0 0.0
    %635 = vmatpush1.msra.mxu0 0.0
    %636 = vmatprep.subr.mxu0 0.0
    %637 = vmatpush1.msra.mxu0 0.0
    %638 = vmatprep.subr.mxu0 0.0
    %639 = vmatpush1.msra.mxu0 0.0
    %640 = vmatprep.subr.mxu0 0.0
    %641 = vmatpush1.msra.mxu0 0.0
    %642 = vmatprep.subr.mxu0 0.0
    %643 = vmatpush1.msra.mxu0 0.0
    %644 = vmatprep.subr.mxu0 0.0
    %645 = vmatpush1.msra.mxu0 0.0
    %646 = vmatprep.mubr.f32.mxu0 0.0
    %647 = vmatmul.mubr.f32.gmra.mrb[0].mxu0 %v577
    %v648 = vpop.f32.mrb[0].mxu0
    %v649 = vadd.f32 %v573, %v648
    %v650 = vpop.f32.mrb[0].mxu0
    %651 = vmatprep.mubr.f32.mxu0 0.0
    %652 = vmatmul.mubr.f32.gmra.mrb[0].mxu0 %v580
    %v653 = vpop.f32.mrb[0].mxu0
    %v654 = vadd.f32 %v573, %v653
    %v655 = vpop.f32.mrb[0].mxu0
    %656 = vdwg.mxu0
    %v657 = vmax.f32 %v649, 0.0
    %v658 = vmax.f32 %v654, 0.0
    %v659 = vld [vmem:[%s9] sm:$0x3]
    %v660 = vld [vmem:[%s11] sm:$0x3]
    %662 = vset.pattern.permute.xlu0 0
    %663 = vperm.xlu0 %662, %v660
    %v664 = vpop.permute.xlu0 %663
    %v667 = vsel %vm575, %v659, 0
    %v670 = vsel %vm575, %v657, 0
    %v673 = vsel %vm575, %v658, 0
    %675 = vmatprep.subr.mxu0 0.0
    %676 = vmatpush1.xpose.msra.mxu0 %v670
    %677 = vmatprep.subr.mxu0 0.0
    %678 = vmatpush1.xpose.msra.mxu0 %v673
    %679 = vmatprep.subr.mxu0 0.0
    %680 = vmatpush1.xpose.msra.mxu0 0.0
    %681 = vmatprep.subr.mxu0 0.0
    %682 = vmatpush1.xpose.msra.mxu0 0.0
    %683 = vmatprep.subr.mxu0 0.0
    %684 = vmatpush1.xpose.msra.mxu0 0.0
    %685 = vmatprep.subr.mxu0 0.0
    %686 = vmatpush1.xpose.msra.mxu0 0.0
    %687 = vmatprep.subr.mxu0 0.0
    %688 = vmatpush1.xpose.msra.mxu0 0.0
    %689 = vmatprep.subr.mxu0 0.0
    %690 = vmatpush1.xpose.msra.mxu0 0.0
    %691 = vmatprep.subr.mxu0 0.0
    %692 = vmatpush1.xpose.msra.mxu0 0.0
    %693 = vmatprep.subr.mxu0 0.0
    %694 = vmatpush1.xpose.msra.mxu0 0.0
    %695 = vmatprep.subr.mxu0 0.0
    %696 = vmatpush1.xpose.msra.mxu0 0.0
    %697 = vmatprep.subr.mxu0 0.0
    %698 = vmatpush1.xpose.msra.mxu0 0.0
    %699 = vmatprep.subr.mxu0 0.0
    %700 = vmatpush1.xpose.msra.mxu0 0.0
    %701 = vmatprep.subr.mxu0 0.0
    %702 = vmatpush1.xpose.msra.mxu0 0.0
    %703 = vmatprep.subr.mxu0 0.0
    %704 = vmatpush1.xpose.msra.mxu0 0.0
    %705 = vmatprep.subr.mxu0 0.0
    %706 = vmatpush1.xpose.msra.mxu0 0.0
    %707 = vmatprep.subr.mxu0 0.0
    %708 = vmatpush1.xpose.msra.mxu0 0.0
    %709 = vmatprep.subr.mxu0 0.0
    %710 = vmatpush1.xpose.msra.mxu0 0.0
    %711 = vmatprep.subr.mxu0 0.0
    %712 = vmatpush1.xpose.msra.mxu0 0.0
    %713 = vmatprep.subr.mxu0 0.0
    %714 = vmatpush1.xpose.msra.mxu0 0.0
    %715 = vmatprep.subr.mxu0 0.0
    %716 = vmatpush1.xpose.msra.mxu0 0.0
    %717 = vmatprep.subr.mxu0 0.0
    %718 = vmatpush1.xpose.msra.mxu0 0.0
    %719 = vmatprep.subr.mxu0 0.0
    %720 = vmatpush1.xpose.msra.mxu0 0.0
    %721 = vmatprep.subr.mxu0 0.0
    %722 = vmatpush1.xpose.msra.mxu0 0.0
    %723 = vmatprep.subr.mxu0 0.0
    %724 = vmatpush1.xpose.msra.mxu0 0.0
    %725 = vmatprep.subr.mxu0 0.0
    %726 = vmatpush1.xpose.msra.mxu0 0.0
    %727 = vmatprep.subr.mxu0 0.0
    %728 = vmatpush1.xpose.msra.mxu0 0.0
    %729 = vmatprep.subr.mxu0 0.0
    %730 = vmatpush1.xpose.msra.mxu0 0.0
    %731 = vmatprep.subr.mxu0 0.0
    %732 = vmatpush1.xpose.msra.mxu0 0.0
    %733 = vmatprep.subr.mxu0 0.0
    %734 = vmatpush1.xpose.msra.mxu0 0.0
    %735 = vmatprep.subr.mxu0 0.0
    %736 = vmatpush1.xpose.msra.mxu0 0.0
    %737 = vmatprep.subr.mxu0 0.0
    %738 = vmatpush1.xpose.msra.mxu0 0.0
    %739 = vmatprep.mubr.f32.mxu0 0.0
    %740 = vmatmul.mubr.f32.gmra.mrb[0].mxu0 %v667
    %v741 = vpop.f32.mrb[0].mxu0
    %v742 = vadd.f32 %v664, %v741
    %v743 = vpop.f32.mrb[0].mxu0
    %744 = vdwg.mxu0
    %vm745 = vcmask 123904
    %746 = vst.msk [vmem:[#allocation2] sm:$0x3] %vm745, %v742
    // Predicated region
    $region50: #{tpu_custom_call.1} parent=1 // pred_check
      _
    $region51: #{tpu_custom_call.1} parent=1 // pred_check_branch
      %748 = sbr.rel (0) target = $region53
    $region52: #{tpu_custom_call.1} parent=1 // pred_region
      %s750 = ssub.s32 32, 32
      %751 = vsyncadd [#allocation3], %s750
      %s753 = sshll.u32 [#allocation2], 4
      %s754 = int_to_ptr.vmem [resolvable:$true] %s753
      %756 = dma.vmem_to_hbm [thread:$0]  %s754, 32, %s12, [#allocation3]
    $region53: #{tpu_custom_call.1} parent=1 // pred_fallthru
      _
    // Predicated region
    $region54: #{tpu_custom_call.1} parent=1 // pred_check
      _
    $region55: #{tpu_custom_call.1} parent=1 // pred_check_branch
      %758 = sbr.rel (0) target = $region57
    $region56: #{tpu_custom_call.1} parent=1 // pred_region
      %759 = dma.done [#allocation3], 32
    $region57: #{tpu_custom_call.1} parent=1 // pred_fallthru
      _
    %760 = vsyncpa [#allocation3], 1

</llo_original>
